<compile_context>
chip_gen: v7x
topology: tpu7x:2x2x1
jax: 0.10.0
libtpu: 0.0.40
codegen_flags: <defaults>
</compile_context>

<pallas_src>
import jax
import jax.numpy as jnp
from jax.experimental import pallas as pl
from jax.experimental.pallas import tpu as pltpu

HIDDEN = 256


def _critic_kernel(s_ref, a_ref, w1s_ref, w1a_ref, b1_ref, w2_ref, b2_ref,
                   w3_ref, b3_ref, q_ref):
    # Fused concat: h1 = state @ W1_s + action @ W1_a + b1  (bf16 MXU, f32 acc)
    s = s_ref[...].astype(jnp.bfloat16)
    a = a_ref[...].astype(jnp.bfloat16)
    h1 = jnp.dot(s, w1s_ref[...], preferred_element_type=jnp.float32)
    h1 = h1 + jnp.dot(a, w1a_ref[...], preferred_element_type=jnp.float32)
    h1 = jnp.maximum(h1 + b1_ref[...], 0.0)

    h2 = jnp.dot(h1.astype(jnp.bfloat16), w2_ref[...],
                 preferred_element_type=jnp.float32)
    h2 = jnp.maximum(h2 + b2_ref[...], 0.0)

    # Final layer: N=1 matmul replaced by VPU multiply + lane reduction against
    # a lane-dense (1, 256) weight.
    q = jnp.sum(h2 * w3_ref[...], axis=-1, keepdims=True) + b3_ref[...]
    q_ref[...] = q.astype(q_ref.dtype)


def ac_critic_forward(state, action, params, *, tile_b=512):
    """q = l3(relu(l2(relu(l1(cat[state, action]))))), returned as (B, 1) f32."""
    w1s, w1a, b1, w2, b2, w3, b3 = params
    B, state_dim = state.shape
    action_dim = action.shape[1]

    # Batch tiling: tile is a multiple of 8 sublanes; pad batch up to a whole
    # number of tiles (padded rows are computed and then sliced off).
    tile_b = min(tile_b, ((B + 7) // 8) * 8)
    tile_b = ((tile_b + 7) // 8) * 8
    padded_b = pl.cdiv(B, tile_b) * tile_b
    if padded_b != B:
        pad = padded_b - B
        state = jnp.pad(state, ((0, pad), (0, 0)))
        action = jnp.pad(action, ((0, pad), (0, 0)))
    n_tiles = padded_b // tile_b

    const2d = lambda i: (0, 0)  # weights/biases: same block every step -> VMEM-resident

    flops = 2 * padded_b * ((state_dim + action_dim) * HIDDEN
                            + HIDDEN * HIDDEN + HIDDEN)
    bytes_accessed = (
        padded_b * (state_dim + action_dim) * 4            # activations in (f32)
        + (state_dim + action_dim + HIDDEN) * HIDDEN * 2   # bf16 weights
        + (3 * HIDDEN + 1) * 4                             # biases + w3 (f32)
        + padded_b * 4)                                    # q out

    out = pl.pallas_call(
        _critic_kernel,
        out_shape=jax.ShapeDtypeStruct((padded_b, 1), jnp.float32),
        grid=(n_tiles,),
        in_specs=[
            pl.BlockSpec((tile_b, state_dim), lambda i: (i, 0)),   # state tile
            pl.BlockSpec((tile_b, action_dim), lambda i: (i, 0)),  # action tile
            pl.BlockSpec((state_dim, HIDDEN), const2d),            # W1_s (bf16)
            pl.BlockSpec((action_dim, HIDDEN), const2d),           # W1_a (bf16)
            pl.BlockSpec((1, HIDDEN), const2d),                    # b1
            pl.BlockSpec((HIDDEN, HIDDEN), const2d),               # W2 (bf16)
            pl.BlockSpec((1, HIDDEN), const2d),                    # b2
            pl.BlockSpec((1, HIDDEN), const2d),                    # w3 (lane-dense)
            pl.BlockSpec((1, 1), const2d),                         # b3
        ],
        out_specs=pl.BlockSpec((tile_b, 1), lambda i: (i, 0)),
        compiler_params=pltpu.CompilerParams(
            dimension_semantics=("parallel",)),
        cost_estimate=pl.CostEstimate(
            flops=flops, transcendentals=0, bytes_accessed=bytes_accessed),
    )(state, action, w1s, w1a, b1, w2, b2, w3, b3)

    return out[:B]


def init_params(key, state_dim, action_dim):
    """Mirror nn.Linear default init (U[-1/sqrt(fan_in), 1/sqrt(fan_in)]).

    Weights are stored transposed (in_features, out_features); W1 is split into
    its state / action row-blocks; matmul weights are kept in bf16; the final
    layer weight is stored lane-dense as (1, 256) in f32.
    """
    def linear(k, fan_in, fan_out):
        kw, kb = jax.random.split(k)
        bound = 1.0 / (fan_in ** 0.5)
        w = jax.random.uniform(kw, (fan_in, fan_out), jnp.float32, -bound, bound)
        b = jax.random.uniform(kb, (1, fan_out), jnp.float32, -bound, bound)
        return w, b

    k1, k2, k3 = jax.random.split(key, 3)
    w1, b1 = linear(k1, state_dim + action_dim, HIDDEN)
    w2, b2 = linear(k2, HIDDEN, HIDDEN)
    w3, b3 = linear(k3, HIDDEN, 1)

    w1s = w1[:state_dim].astype(jnp.bfloat16)
    w1a = w1[state_dim:].astype(jnp.bfloat16)
    w2 = w2.astype(jnp.bfloat16)
    w3 = w3.reshape(1, HIDDEN)     # lane-dense final weight (f32)
    b3 = b3.reshape(1, 1)
    return (w1s, w1a, b1, w2, b2, w3, b3)


if __name__ == "__main__":
    state_dim, action_dim, batch = 12, 4, 8

    key = jax.random.PRNGKey(0)
    kp, ks, ka = jax.random.split(key, 3)
    params = init_params(kp, state_dim, action_dim)
    state = jax.random.normal(ks, (batch, state_dim), jnp.float32)
    action = jax.random.normal(ka, (batch, action_dim), jnp.float32)

    q = ac_critic_forward(state, action, params)
    jax.block_until_ready(q)
    assert q.shape == (batch, 1)

    # Pure-JAX reference with identical numerics (bf16 matmul operands,
    # f32 accumulation / bias / ReLU) to confirm kernel semantics.
    w1s, w1a, b1, w2, b2, w3, b3 = params
    f32 = lambda x: x.astype(jnp.float32)
    bf = lambda x: x.astype(jnp.bfloat16).astype(jnp.float32)
    h1 = jnp.maximum(bf(state) @ f32(w1s) + bf(action) @ f32(w1a) + b1, 0.0)
    h2 = jnp.maximum(bf(h1) @ f32(w2) + b2, 0.0)
    ref = jnp.sum(h2 * w3, axis=-1, keepdims=True) + b3
    assert jnp.allclose(q, ref, atol=2e-3, rtol=2e-3), \
        float(jnp.max(jnp.abs(q - ref)))

    print("KERNEL_OK")
</pallas_src>

<mosaic_0001>
module attributes {stable_mosaic.version = 11 : i64} {
  func.func @_critic_kernel(%arg0: i32, %arg1: memref<8x12xf32, #tpu.memory_space<vmem>>, %arg2: memref<8x4xf32, #tpu.memory_space<vmem>>, %arg3: memref<12x256xbf16, #tpu.memory_space<vmem>>, %arg4: memref<4x256xbf16, #tpu.memory_space<vmem>>, %arg5: memref<1x256xf32, #tpu.memory_space<vmem>>, %arg6: memref<256x256xbf16, #tpu.memory_space<vmem>>, %arg7: memref<1x256xf32, #tpu.memory_space<vmem>>, %arg8: memref<1x256xf32, #tpu.memory_space<vmem>>, %arg9: memref<1x1xf32, #tpu.memory_space<vmem>>, %arg10: memref<8x1xf32, #tpu.memory_space<vmem>>) attributes {dimension_semantics = [#tpu.dimension_semantics<parallel>], iteration_bounds = array<i64: 1>, scalar_prefetch = 0 : i64, scratch_operands = 0 : i64, tpu.core_type = #tpu.core_type<tc>, window_params = [{transform_indices = @transform_0, window_bounds = array<i64: 8, 12>}, {transform_indices = @transform_1, window_bounds = array<i64: 8, 4>}, {pipeline_mode = #tpu.pipeline_mode<synchronous>, transform_indices = @transform_2, window_bounds = array<i64: 12, 256>}, {pipeline_mode = #tpu.pipeline_mode<synchronous>, transform_indices = @transform_3, window_bounds = array<i64: 4, 256>}, {pipeline_mode = #tpu.pipeline_mode<synchronous>, transform_indices = @transform_4, window_bounds = array<i64: 1, 256>}, {pipeline_mode = #tpu.pipeline_mode<synchronous>, transform_indices = @transform_5, window_bounds = array<i64: 256, 256>}, {pipeline_mode = #tpu.pipeline_mode<synchronous>, transform_indices = @transform_6, window_bounds = array<i64: 1, 256>}, {pipeline_mode = #tpu.pipeline_mode<synchronous>, transform_indices = @transform_7, window_bounds = array<i64: 1, 256>}, {pipeline_mode = #tpu.pipeline_mode<synchronous>, transform_indices = @transform_8, window_bounds = array<i64: 1, 1>}, {transform_indices = @transform_9, window_bounds = array<i64: 8, 1>}]} {
    %c0 = arith.constant 0 : index
    %c0_0 = arith.constant 0 : index
    %0 = vector.load %arg1[%c0, %c0_0] : memref<8x12xf32, #tpu.memory_space<vmem>>, vector<8x12xf32>
    %1 = arith.truncf %0 : vector<8x12xf32> to vector<8x12xbf16>
    %c0_1 = arith.constant 0 : index
    %c0_2 = arith.constant 0 : index
    %2 = vector.load %arg2[%c0_1, %c0_2] : memref<8x4xf32, #tpu.memory_space<vmem>>, vector<8x4xf32>
    %3 = arith.truncf %2 : vector<8x4xf32> to vector<8x4xbf16>
    %c0_3 = arith.constant 0 : index
    %c0_4 = arith.constant 0 : index
    %4 = vector.load %arg3[%c0_3, %c0_4] : memref<12x256xbf16, #tpu.memory_space<vmem>>, vector<12x256xbf16>
    %cst = arith.constant dense<0.000000e+00> : vector<8x256xf32>
    %5 = tpu.matmul %1, %4, %cst {dimension_numbers = #tpu.dot_dimension_numbers<[1], [0], [0], [1], [0, 0, 1, 1], [], []>} : vector<8x12xbf16>, vector<12x256xbf16>, vector<8x256xf32> -> vector<8x256xf32>
    %c0_5 = arith.constant 0 : index
    %c0_6 = arith.constant 0 : index
    %6 = vector.load %arg4[%c0_5, %c0_6] : memref<4x256xbf16, #tpu.memory_space<vmem>>, vector<4x256xbf16>
    %cst_7 = arith.constant dense<0.000000e+00> : vector<8x256xf32>
    %7 = tpu.matmul %3, %6, %cst_7 {dimension_numbers = #tpu.dot_dimension_numbers<[1], [0], [0], [1], [0, 0, 1, 1], [], []>} : vector<8x4xbf16>, vector<4x256xbf16>, vector<8x256xf32> -> vector<8x256xf32>
    %8 = arith.addf %5, %7 : vector<8x256xf32>
    %c0_8 = arith.constant 0 : index
    %c0_9 = arith.constant 0 : index
    %9 = vector.load %arg5[%c0_8, %c0_9] : memref<1x256xf32, #tpu.memory_space<vmem>>, vector<1x256xf32>
    %10 = vector.broadcast %9 : vector<1x256xf32> to vector<8x256xf32>
    %11 = arith.addf %8, %10 : vector<8x256xf32>
    %cst_10 = arith.constant 0.000000e+00 : f32
    %12 = vector.broadcast %cst_10 : f32 to vector<8x256xf32>
    %13 = arith.maximumf %11, %12 : vector<8x256xf32>
    %14 = arith.truncf %13 : vector<8x256xf32> to vector<8x256xbf16>
    %c0_11 = arith.constant 0 : index
    %c0_12 = arith.constant 0 : index
    %15 = vector.load %arg6[%c0_11, %c0_12] : memref<256x256xbf16, #tpu.memory_space<vmem>>, vector<256x256xbf16>
    %cst_13 = arith.constant dense<0.000000e+00> : vector<8x256xf32>
    %16 = tpu.matmul %14, %15, %cst_13 {dimension_numbers = #tpu.dot_dimension_numbers<[1], [0], [0], [1], [0, 0, 1, 1], [], []>} : vector<8x256xbf16>, vector<256x256xbf16>, vector<8x256xf32> -> vector<8x256xf32>
    %c0_14 = arith.constant 0 : index
    %c0_15 = arith.constant 0 : index
    %17 = vector.load %arg7[%c0_14, %c0_15] : memref<1x256xf32, #tpu.memory_space<vmem>>, vector<1x256xf32>
    %18 = vector.broadcast %17 : vector<1x256xf32> to vector<8x256xf32>
    %19 = arith.addf %16, %18 : vector<8x256xf32>
    %cst_16 = arith.constant 0.000000e+00 : f32
    %20 = vector.broadcast %cst_16 : f32 to vector<8x256xf32>
    %21 = arith.maximumf %19, %20 : vector<8x256xf32>
    %c0_17 = arith.constant 0 : index
    %c0_18 = arith.constant 0 : index
    %22 = vector.load %arg8[%c0_17, %c0_18] : memref<1x256xf32, #tpu.memory_space<vmem>>, vector<1x256xf32>
    %23 = vector.broadcast %22 : vector<1x256xf32> to vector<8x256xf32>
    %24 = arith.mulf %21, %23 : vector<8x256xf32>
    %cst_19 = arith.constant dense<0.000000e+00> : vector<8xf32>
    %25 = vector.multi_reduction <add>, %24, %cst_19 [1] : vector<8x256xf32> to vector<8xf32>
    %26 = vector.shape_cast %25 : vector<8xf32> to vector<8x1xf32>
    %c0_20 = arith.constant 0 : index
    %c0_21 = arith.constant 0 : index
    %27 = vector.load %arg9[%c0_20, %c0_21] : memref<1x1xf32, #tpu.memory_space<vmem>>, vector<1x1xf32>
    %28 = vector.broadcast %27 : vector<1x1xf32> to vector<8x1xf32>
    %29 = arith.addf %26, %28 : vector<8x1xf32>
    %c0_22 = arith.constant 0 : index
    %c0_23 = arith.constant 0 : index
    %30 = vector.load %arg10[%c0_22, %c0_23] : memref<8x1xf32, #tpu.memory_space<vmem>>, vector<8x1xf32>
    tpu.vector_store %arg10[%c0_22, %c0_23], %29 {strides = array<i32>} : memref<8x1xf32, #tpu.memory_space<vmem>>, vector<8x1xf32>,
    return
  }
  func.func @transform_0(%arg0: i32) -> (i32, i32) {
    %c0_i32 = arith.constant 0 : i32
    %c0_i32_0 = arith.constant 0 : i32
    return %arg0, %c0_i32 : i32, i32
  }
  func.func @transform_1(%arg0: i32) -> (i32, i32) {
    %c0_i32 = arith.constant 0 : i32
    %c0_i32_0 = arith.constant 0 : i32
    return %arg0, %c0_i32 : i32, i32
  }
  func.func @transform_2(%arg0: i32) -> (i32, i32) {
    %c0_i32 = arith.constant 0 : i32
    %c0_i32_0 = arith.constant 0 : i32
    %c0_i32_1 = arith.constant 0 : i32
    return %c0_i32, %c0_i32_0 : i32, i32
  }
  func.func @transform_3(%arg0: i32) -> (i32, i32) {
    %c0_i32 = arith.constant 0 : i32
    %c0_i32_0 = arith.constant 0 : i32
    %c0_i32_1 = arith.constant 0 : i32
    return %c0_i32, %c0_i32_0 : i32, i32
  }
  func.func @transform_4(%arg0: i32) -> (i32, i32) {
    %c0_i32 = arith.constant 0 : i32
    %c0_i32_0 = arith.constant 0 : i32
    %c0_i32_1 = arith.constant 0 : i32
    return %c0_i32, %c0_i32_0 : i32, i32
  }
  func.func @transform_5(%arg0: i32) -> (i32, i32) {
    %c0_i32 = arith.constant 0 : i32
    %c0_i32_0 = arith.constant 0 : i32
    %c0_i32_1 = arith.constant 0 : i32
    return %c0_i32, %c0_i32_0 : i32, i32
  }
  func.func @transform_6(%arg0: i32) -> (i32, i32) {
    %c0_i32 = arith.constant 0 : i32
    %c0_i32_0 = arith.constant 0 : i32
    %c0_i32_1 = arith.constant 0 : i32
    return %c0_i32, %c0_i32_0 : i32, i32
  }
  func.func @transform_7(%arg0: i32) -> (i32, i32) {
    %c0_i32 = arith.constant 0 : i32
    %c0_i32_0 = arith.constant 0 : i32
    %c0_i32_1 = arith.constant 0 : i32
    return %c0_i32, %c0_i32_0 : i32, i32
  }
  func.func @transform_8(%arg0: i32) -> (i32, i32) {
    %c0_i32 = arith.constant 0 : i32
    %c0_i32_0 = arith.constant 0 : i32
    %c0_i32_1 = arith.constant 0 : i32
    return %c0_i32, %c0_i32_0 : i32, i32
  }
  func.func @transform_9(%arg0: i32) -> (i32, i32) {
    %c0_i32 = arith.constant 0 : i32
    %c0_i32_0 = arith.constant 0 : i32
    return %arg0, %c0_i32 : i32, i32
  }
}

</mosaic_0001>

<llo_original>
// kernel: tpu_custom_call.1
$region0: #{tpu_custom_call.1}
  #allocation0 [shape = 'u32[]', space=smem, size = 0x4, offset = 0x4, fixed_abs, tag = 'smem constant byte address 0x4 - core index']
  #allocation1 [shape = 'u32[144,128]{1,0:T(1,128)}', space=vmem, size = 0x12000, scoped, tag = 'internal scratch']
  #allocation2 [shape = 'f32[1,1]{1,0:T(1,128)S(1)}', space=vmem, size = 0x200, scoped, tag = 'scoped memory for tpu_custom_call.1']
  %s0 = inlined_call_operand.hbm [shape: f32[8,12], index: 0, kind: input, shape index: {}]
  %s1 = inlined_call_operand.vmem [shape: f32[8,4], index: 1, kind: input, shape index: {}]
  %s2 = inlined_call_operand.vmem [shape: bf16[12,256], index: 2, kind: input, shape index: {}]
  %s3 = inlined_call_operand.vmem [shape: bf16[4,256], index: 3, kind: input, shape index: {}]
  %s4 = inlined_call_operand.vmem [shape: f32[1,256], index: 4, kind: input, shape index: {}]
  %s5 = inlined_call_operand.hbm [shape: bf16[256,256], index: 5, kind: input, shape index: {}]
  %s6 = inlined_call_operand.vmem [shape: f32[1,256], index: 6, kind: input, shape index: {}]
  %s7 = inlined_call_operand.vmem [shape: f32[1,256], index: 7, kind: input, shape index: {}]
  %s8 = inlined_call_operand.<no memory space> [shape: f32[1,1], index: 8, kind: input, shape index: {}]
  %s9 = inlined_call_operand.vmem [shape: f32[8,1], index: 9, kind: output, shape index: {}]
  %s10 = sld [smem:[#allocation0]]
  $region54: #{tpu_custom_call.1} parent=0
    _
  %s12 = ssub.s32 1, %s10
  %s13 = scalar_select 0, %s12, %s10
  %v14 = vstv %s8
  %15 = vst [vmem:[#allocation2] sm:$0x1] %v14
  $region1: #{tpu_custom_call.1} parent=0
    #allocation3 [shape = 'u8[4096]{0}', space=vmem, size = 0x1000, scoped, tag = 'input window, operand 0, single buffered']
    #allocation4 [shape = 's32[1]{0}', space=sflag, size = 0x4, scoped, tag = 'scoped memory for tpu_custom_call.1']
    #allocation5 [shape = 'u8[131072]{0}', space=vmem, size = 0x20000, scoped, tag = 'input window, operand 5, single buffered']
    #allocation6 [shape = 's32[1]{0}', space=sflag, size = 0x4, scoped, tag = 'scoped memory for tpu_custom_call.1']
    %16 = vsyncpa [#allocation4], 0
    %17 = vsyncpa [#allocation6], 0
    // Predicated region
    $region2: #{tpu_custom_call.1} parent=1 // pred_check
      _
    $region3: #{tpu_custom_call.1} parent=1 // pred_check_branch
      %19 = sbr.rel (0) target = $region5
    $region4: #{tpu_custom_call.1} parent=1 // pred_region
      %s21 = ssub.s32 128, 128
      %22 = vsyncadd [#allocation4], %s21
      %s24 = sshll.u32 [#allocation3], 4
      %s25 = int_to_ptr.vmem [resolvable:$true] %s24
      %27 = dma.hbm_to_vmem [thread:$0]  %s0, 128, %s25, [#allocation4]
    $region5: #{tpu_custom_call.1} parent=1 // pred_fallthru
      _
    // Predicated region
    $region6: #{tpu_custom_call.1} parent=1 // pred_check
      _
    $region7: #{tpu_custom_call.1} parent=1 // pred_check_branch
      %29 = sbr.rel (0) target = $region9
    $region8: #{tpu_custom_call.1} parent=1 // pred_region
      _
    $region9: #{tpu_custom_call.1} parent=1 // pred_fallthru
      _
    // Predicated region
    $region10: #{tpu_custom_call.1} parent=1 // pred_check
      _
    $region11: #{tpu_custom_call.1} parent=1 // pred_check_branch
      %31 = sbr.rel (0) target = $region13
    $region12: #{tpu_custom_call.1} parent=1 // pred_region
      _
    $region13: #{tpu_custom_call.1} parent=1 // pred_fallthru
      _
    // Predicated region
    $region14: #{tpu_custom_call.1} parent=1 // pred_check
      _
    $region15: #{tpu_custom_call.1} parent=1 // pred_check_branch
      %33 = sbr.rel (0) target = $region17
    $region16: #{tpu_custom_call.1} parent=1 // pred_region
      _
    $region17: #{tpu_custom_call.1} parent=1 // pred_fallthru
      _
    // Predicated region
    $region18: #{tpu_custom_call.1} parent=1 // pred_check
      _
    $region19: #{tpu_custom_call.1} parent=1 // pred_check_branch
      %35 = sbr.rel (0) target = $region21
    $region20: #{tpu_custom_call.1} parent=1 // pred_region
      _
    $region21: #{tpu_custom_call.1} parent=1 // pred_fallthru
      _
    // Predicated region
    $region22: #{tpu_custom_call.1} parent=1 // pred_check
      _
    $region23: #{tpu_custom_call.1} parent=1 // pred_check_branch
      %37 = sbr.rel (0) target = $region25
    $region24: #{tpu_custom_call.1} parent=1 // pred_region
      %s39 = ssub.s32 4096, 4096
      %40 = vsyncadd [#allocation6], %s39
      %s41 = sshll.u32 [#allocation5], 4
      %s42 = int_to_ptr.vmem [resolvable:$true] %s41
      %47 = dma.hbm_to_vmem [thread:$0]  %s5, 4096, %s42, [#allocation6], 128, 128, 8
    $region25: #{tpu_custom_call.1} parent=1 // pred_fallthru
      _
    // Predicated region
    $region26: #{tpu_custom_call.1} parent=1 // pred_check
      _
    $region27: #{tpu_custom_call.1} parent=1 // pred_check_branch
      %49 = sbr.rel (0) target = $region29
    $region28: #{tpu_custom_call.1} parent=1 // pred_region
      _
    $region29: #{tpu_custom_call.1} parent=1 // pred_fallthru
      _
    // Predicated region
    $region30: #{tpu_custom_call.1} parent=1 // pred_check
      _
    $region31: #{tpu_custom_call.1} parent=1 // pred_check_branch
      %51 = sbr.rel (0) target = $region33
    $region32: #{tpu_custom_call.1} parent=1 // pred_region
      _
    $region33: #{tpu_custom_call.1} parent=1 // pred_fallthru
      _
    // Predicated region
    $region34: #{tpu_custom_call.1} parent=1 // pred_check
      _
    $region35: #{tpu_custom_call.1} parent=1 // pred_check_branch
      %53 = sbr.rel (0) target = $region37
    $region36: #{tpu_custom_call.1} parent=1 // pred_region
      _
    $region37: #{tpu_custom_call.1} parent=1 // pred_fallthru
      _
    // Predicated region
    $region38: #{tpu_custom_call.1} parent=1 // pred_check
      _
    $region39: #{tpu_custom_call.1} parent=1 // pred_check_branch
      %55 = sbr.rel (0) target = $region41
    $region40: #{tpu_custom_call.1} parent=1 // pred_region
      %56 = dma.done [#allocation4], 128
    $region41: #{tpu_custom_call.1} parent=1 // pred_fallthru
      _
    // Predicated region
    $region42: #{tpu_custom_call.1} parent=1 // pred_check
      _
    $region43: #{tpu_custom_call.1} parent=1 // pred_check_branch
      %58 = sbr.rel (0) target = $region45
    $region44: #{tpu_custom_call.1} parent=1 // pred_region
      %59 = dma.done [#allocation6], 4096
    $region45: #{tpu_custom_call.1} parent=1 // pred_fallthru
      _
    %v61 = vld [vmem:[#allocation3] sm:$0xff]
    %v62 = vpack.c.bf16 %v61, %v61
    %v63 = vld [vmem:[%s1] sm:$0xff]
    %v64 = vpack.c.bf16 %v63, %v63
    %v65 = vld [vmem:[%s2] sm:$0xff]
    %v66 = vld [vmem:[%s2 + $0x8] sm:$0x33]
    %v67 = vld [vmem:[%s3] sm:$0xf]
    %v70 = vunpack.c.l.s4 1983009808
    %v71 = vunpack.c.0.s8 %v70
    %v72 = vlaneseq
    %v73 = vshrl.u32 %v72, 7
    %v74 = vsub.s32 %v71, %v73
    %v75 = vrot.slane %v67, %v74
    %v76 = vcombine.high %v75, %v75
    %vm77 = vcmask 31744
    %v79 = vsel %vm77, %v64, 0
    %vm81 = vcmask 1041408
    %v83 = vsel %vm81, %v75, 0
    %v86 = vsel %vm81, %v76, 0
    %88 = vmatprep.subr.bf16.mxu0 %v86
    %89 = vmatpush1.bf16.msra.mxu0 %v83
    %90 = vmatprep.subr.bf16.mxu0 0
    %91 = vmatpush1.bf16.msra.mxu0 0
    %92 = vmatprep.subr.bf16.mxu0 0
    %93 = vmatpush1.bf16.msra.mxu0 0
    %94 = vmatprep.subr.bf16.mxu0 0
    %95 = vmatpush1.bf16.msra.mxu0 0
    %96 = vmatprep.subr.bf16.mxu0 0
    %97 = vmatpush1.bf16.msra.mxu0 0
    %98 = vmatprep.subr.bf16.mxu0 0
    %99 = vmatpush1.bf16.msra.mxu0 0
    %100 = vmatprep.subr.bf16.mxu0 0
    %101 = vmatpush1.bf16.msra.mxu0 0
    %102 = vmatprep.subr.bf16.mxu0 0
    %103 = vmatpush1.bf16.msra.mxu0 0
    %104 = vmatprep.subr.bf16.mxu0 0
    %105 = vmatpush1.bf16.msra.mxu0 0
    %106 = vmatprep.subr.bf16.mxu0 0
    %107 = vmatpush1.bf16.msra.mxu0 0
    %108 = vmatprep.subr.bf16.mxu0 0
    %109 = vmatpush1.bf16.msra.mxu0 0
    %110 = vmatprep.subr.bf16.mxu0 0
    %111 = vmatpush1.bf16.msra.mxu0 0
    %112 = vmatprep.subr.bf16.mxu0 0
    %113 = vmatpush1.bf16.msra.mxu0 0
    %114 = vmatprep.subr.bf16.mxu0 0
    %115 = vmatpush1.bf16.msra.mxu0 0
    %116 = vmatprep.subr.bf16.mxu0 0
    %117 = vmatpush1.bf16.msra.mxu0 0
    %118 = vmatprep.subr.bf16.mxu0 0
    %119 = vmatpush1.bf16.msra.mxu0 0
    %120 = vmatprep.mubr.bf16.mxu0 0
    %121 = vmatmul.mubr.bf16.gmra.mrb[0].mxu0 %v79
    %v122 = vpop.f32.mrb[0].mxu0
    %v123 = vadd.f32 0.0, %v122
    %v124 = vpop.f32.mrb[0].mxu0
    %v125 = vadd.f32 0.0, %v124
    %v126 = vpop.f32.mrb[0].mxu0
    %v127 = vpop.f32.mrb[0].mxu0
    %128 = vdwg.mxu0
    %v131 = vunpack.c.l.b16 %v65
    %v132 = vunpack.c.h.b16 %v65
    %v133 = vunpack.c.l.b16 %v66
    %v134 = vunpack.c.h.b16 %v66
    %v135 = vpack.c.b16 %v133, %v131
    %v136 = vpack.c.b16 %v134, %v132
    %vm137 = vcmask 97280
    %v139 = vsel %vm137, %v62, 0
    %vm141 = vcmask 1045504
    %v143 = vsel %vm141, %v135, 0
    %v146 = vsel %vm141, %v136, 0
    %148 = vmatprep.subr.bf16.mxu0 %v146
    %149 = vmatpush1.bf16.msra.mxu0 %v143
    %150 = vmatprep.subr.bf16.mxu0 0
    %151 = vmatpush1.bf16.msra.mxu0 0
    %152 = vmatprep.subr.bf16.mxu0 0
    %153 = vmatpush1.bf16.msra.mxu0 0
    %154 = vmatprep.subr.bf16.mxu0 0
    %155 = vmatpush1.bf16.msra.mxu0 0
    %156 = vmatprep.subr.bf16.mxu0 0
    %157 = vmatpush1.bf16.msra.mxu0 0
    %158 = vmatprep.subr.bf16.mxu0 0
    %159 = vmatpush1.bf16.msra.mxu0 0
    %160 = vmatprep.subr.bf16.mxu0 0
    %161 = vmatpush1.bf16.msra.mxu0 0
    %162 = vmatprep.subr.bf16.mxu0 0
    %163 = vmatpush1.bf16.msra.mxu0 0
    %164 = vmatprep.subr.bf16.mxu0 0
    %165 = vmatpush1.bf16.msra.mxu0 0
    %166 = vmatprep.subr.bf16.mxu0 0
    %167 = vmatpush1.bf16.msra.mxu0 0
    %168 = vmatprep.subr.bf16.mxu0 0
    %169 = vmatpush1.bf16.msra.mxu0 0
    %170 = vmatprep.subr.bf16.mxu0 0
    %171 = vmatpush1.bf16.msra.mxu0 0
    %172 = vmatprep.subr.bf16.mxu0 0
    %173 = vmatpush1.bf16.msra.mxu0 0
    %174 = vmatprep.subr.bf16.mxu0 0
    %175 = vmatpush1.bf16.msra.mxu0 0
    %176 = vmatprep.subr.bf16.mxu0 0
    %177 = vmatpush1.bf16.msra.mxu0 0
    %178 = vmatprep.subr.bf16.mxu0 0
    %179 = vmatpush1.bf16.msra.mxu0 0
    %180 = vmatprep.mubr.bf16.mxu0 0
    %181 = vmatmul.mubr.bf16.gmra.mrb[0].mxu0 %v139
    %v182 = vpop.f32.mrb[0].mxu0
    %v183 = vadd.f32 %v123, %v182
    %v184 = vpop.f32.mrb[0].mxu0
    %v185 = vadd.f32 %v125, %v184
    %v186 = vpop.f32.mrb[0].mxu0
    %v187 = vpop.f32.mrb[0].mxu0
    %188 = vdwg.mxu0
    %v189 = vld [vmem:[%s4] sm:$0x3]
    %v191 = vlaneseq
    %v192 = vshrl.u32 %v191, 7
    %v193 = vsub.s32 0, %v192
    %v194 = vrot.slane %v189, %v193
    %v195 = vlaneseq
    %v196 = vshrl.u32 %v195, 7
    %v197 = vsub.s32 1, %v196
    %v198 = vrot.slane %v189, %v197
    %v201 = vadd.f32 %v183, %v194
    %v202 = vadd.f32 %v185, %v198
    %v203 = vmax.f32 %v201, 0.0
    %v204 = vmax.f32 %v202, 0.0
    %v205 = vpack.c.bf16 %v203, %v203
    %v206 = vpack.c.bf16 %v204, %v204
    %v207 = vld [vmem:[#allocation5] sm:$0xff]
    %v208 = vld [vmem:[#allocation5 + $0x8] sm:$0xff]
    %v209 = vld [vmem:[#allocation5 + $0x10] sm:$0xff]
    %v210 = vld [vmem:[#allocation5 + $0x18] sm:$0xff]
    %v211 = vld [vmem:[#allocation5 + $0x20] sm:$0xff]
    %v212 = vld [vmem:[#allocation5 + $0x28] sm:$0xff]
    %v213 = vld [vmem:[#allocation5 + $0x30] sm:$0xff]
    %v214 = vld [vmem:[#allocation5 + $0x38] sm:$0xff]
    %v215 = vld [vmem:[#allocation5 + $0x40] sm:$0xff]
    %v216 = vld [vmem:[#allocation5 + $0x48] sm:$0xff]
    %v217 = vld [vmem:[#allocation5 + $0x50] sm:$0xff]
    %v218 = vld [vmem:[#allocation5 + $0x58] sm:$0xff]
    %v219 = vld [vmem:[#allocation5 + $0x60] sm:$0xff]
    %v220 = vld [vmem:[#allocation5 + $0x68] sm:$0xff]
    %v221 = vld [vmem:[#allocation5 + $0x70] sm:$0xff]
    %v222 = vld [vmem:[#allocation5 + $0x78] sm:$0xff]
    %v223 = vld [vmem:[#allocation5 + $0x80] sm:$0xff]
    %v224 = vld [vmem:[#allocation5 + $0x88] sm:$0xff]
    %v225 = vld [vmem:[#allocation5 + $0x90] sm:$0xff]
    %v226 = vld [vmem:[#allocation5 + $0x98] sm:$0xff]
    %v227 = vld [vmem:[#allocation5 + $0xa0] sm:$0xff]
    %v228 = vld [vmem:[#allocation5 + $0xa8] sm:$0xff]
    %v229 = vld [vmem:[#allocation5 + $0xb0] sm:$0xff]
    %v230 = vld [vmem:[#allocation5 + $0xb8] sm:$0xff]
    %v231 = vld [vmem:[#allocation5 + $0xc0] sm:$0xff]
    %v232 = vld [vmem:[#allocation5 + $0xc8] sm:$0xff]
    %v233 = vld [vmem:[#allocation5 + $0xd0] sm:$0xff]
    %v234 = vld [vmem:[#allocation5 + $0xd8] sm:$0xff]
    %v235 = vld [vmem:[#allocation5 + $0xe0] sm:$0xff]
    %v236 = vld [vmem:[#allocation5 + $0xe8] sm:$0xff]
    %v237 = vld [vmem:[#allocation5 + $0xf0] sm:$0xff]
    %v238 = vld [vmem:[#allocation5 + $0xf8] sm:$0xff]
    %v239 = vld [vmem:[%s6] sm:$0x3]
    %v241 = vlaneseq
    %v242 = vshrl.u32 %v241, 7
    %v243 = vsub.s32 0, %v242
    %v244 = vrot.slane %v239, %v243
    %v245 = vlaneseq
    %v246 = vshrl.u32 %v245, 7
    %v247 = vsub.s32 1, %v246
    %v248 = vrot.slane %v239, %v247
    %v283 = vunpack.c.l.b16 %v207
    %v284 = vunpack.c.h.b16 %v207
    %v285 = vunpack.c.l.b16 %v208
    %v286 = vunpack.c.h.b16 %v208
    %v287 = vunpack.c.l.b16 %v209
    %v288 = vunpack.c.h.b16 %v209
    %v289 = vunpack.c.l.b16 %v210
    %v290 = vunpack.c.h.b16 %v210
    %v291 = vunpack.c.l.b16 %v211
    %v292 = vunpack.c.h.b16 %v211
    %v293 = vunpack.c.l.b16 %v212
    %v294 = vunpack.c.h.b16 %v212
    %v295 = vunpack.c.l.b16 %v213
    %v296 = vunpack.c.h.b16 %v213
    %v297 = vunpack.c.l.b16 %v214
    %v298 = vunpack.c.h.b16 %v214
    %v299 = vunpack.c.l.b16 %v215
    %v300 = vunpack.c.h.b16 %v215
    %v301 = vunpack.c.l.b16 %v216
    %v302 = vunpack.c.h.b16 %v216
    %v303 = vunpack.c.l.b16 %v217
    %v304 = vunpack.c.h.b16 %v217
    %v305 = vunpack.c.l.b16 %v218
    %v306 = vunpack.c.h.b16 %v218
    %v307 = vunpack.c.l.b16 %v219
    %v308 = vunpack.c.h.b16 %v219
    %v309 = vunpack.c.l.b16 %v220
    %v310 = vunpack.c.h.b16 %v220
    %v311 = vunpack.c.l.b16 %v221
    %v312 = vunpack.c.h.b16 %v221
    %v313 = vunpack.c.l.b16 %v222
    %v314 = vunpack.c.h.b16 %v222
    %v315 = vunpack.c.l.b16 %v223
    %v316 = vunpack.c.h.b16 %v223
    %v317 = vunpack.c.l.b16 %v224
    %v318 = vunpack.c.h.b16 %v224
    %v319 = vunpack.c.l.b16 %v225
    %v320 = vunpack.c.h.b16 %v225
    %v321 = vunpack.c.l.b16 %v226
    %v322 = vunpack.c.h.b16 %v226
    %v323 = vunpack.c.l.b16 %v227
    %v324 = vunpack.c.h.b16 %v227
    %v325 = vunpack.c.l.b16 %v228
    %v326 = vunpack.c.h.b16 %v228
    %v327 = vunpack.c.l.b16 %v229
    %v328 = vunpack.c.h.b16 %v229
    %v329 = vunpack.c.l.b16 %v230
    %v330 = vunpack.c.h.b16 %v230
    %v331 = vunpack.c.l.b16 %v231
    %v332 = vunpack.c.h.b16 %v231
    %v333 = vunpack.c.l.b16 %v232
    %v334 = vunpack.c.h.b16 %v232
    %v335 = vunpack.c.l.b16 %v233
    %v336 = vunpack.c.h.b16 %v233
    %v337 = vunpack.c.l.b16 %v234
    %v338 = vunpack.c.h.b16 %v234
    %v339 = vunpack.c.l.b16 %v235
    %v340 = vunpack.c.h.b16 %v235
    %v341 = vunpack.c.l.b16 %v236
    %v342 = vunpack.c.h.b16 %v236
    %v343 = vunpack.c.l.b16 %v237
    %v344 = vunpack.c.h.b16 %v237
    %v345 = vunpack.c.l.b16 %v238
    %v346 = vunpack.c.h.b16 %v238
    %v347 = vpack.c.b16 %v285, %v283
    %v348 = vpack.c.b16 %v286, %v284
    %v349 = vpack.c.b16 %v289, %v287
    %v350 = vpack.c.b16 %v290, %v288
    %v351 = vpack.c.b16 %v293, %v291
    %v352 = vpack.c.b16 %v294, %v292
    %v353 = vpack.c.b16 %v297, %v295
    %v354 = vpack.c.b16 %v298, %v296
    %v355 = vpack.c.b16 %v301, %v299
    %v356 = vpack.c.b16 %v302, %v300
    %v357 = vpack.c.b16 %v305, %v303
    %v358 = vpack.c.b16 %v306, %v304
    %v359 = vpack.c.b16 %v309, %v307
    %v360 = vpack.c.b16 %v310, %v308
    %v361 = vpack.c.b16 %v313, %v311
    %v362 = vpack.c.b16 %v314, %v312
    %v363 = vpack.c.b16 %v317, %v315
    %v364 = vpack.c.b16 %v318, %v316
    %v365 = vpack.c.b16 %v321, %v319
    %v366 = vpack.c.b16 %v322, %v320
    %v367 = vpack.c.b16 %v325, %v323
    %v368 = vpack.c.b16 %v326, %v324
    %v369 = vpack.c.b16 %v329, %v327
    %v370 = vpack.c.b16 %v330, %v328
    %v371 = vpack.c.b16 %v333, %v331
    %v372 = vpack.c.b16 %v334, %v332
    %v373 = vpack.c.b16 %v337, %v335
    %v374 = vpack.c.b16 %v338, %v336
    %v375 = vpack.c.b16 %v341, %v339
    %v376 = vpack.c.b16 %v342, %v340
    %v377 = vpack.c.b16 %v345, %v343
    %v378 = vpack.c.b16 %v346, %v344
    %411 = vmatprep.subr.bf16.mxu0 %v348
    %412 = vmatpush1.bf16.msra.mxu0 %v347
    %413 = vmatprep.subr.bf16.mxu0 %v350
    %414 = vmatpush1.bf16.msra.mxu0 %v349
    %415 = vmatprep.subr.bf16.mxu0 %v352
    %416 = vmatpush1.bf16.msra.mxu0 %v351
    %417 = vmatprep.subr.bf16.mxu0 %v354
    %418 = vmatpush1.bf16.msra.mxu0 %v353
    %419 = vmatprep.subr.bf16.mxu0 %v356
    %420 = vmatpush1.bf16.msra.mxu0 %v355
    %421 = vmatprep.subr.bf16.mxu0 %v358
    %422 = vmatpush1.bf16.msra.mxu0 %v357
    %423 = vmatprep.subr.bf16.mxu0 %v360
    %424 = vmatpush1.bf16.msra.mxu0 %v359
    %425 = vmatprep.subr.bf16.mxu0 %v362
    %426 = vmatpush1.bf16.msra.mxu0 %v361
    %427 = vmatprep.subr.bf16.mxu0 %v364
    %428 = vmatpush1.bf16.msra.mxu0 %v363
    %429 = vmatprep.subr.bf16.mxu0 %v366
    %430 = vmatpush1.bf16.msra.mxu0 %v365
    %431 = vmatprep.subr.bf16.mxu0 %v368
    %432 = vmatpush1.bf16.msra.mxu0 %v367
    %433 = vmatprep.subr.bf16.mxu0 %v370
    %434 = vmatpush1.bf16.msra.mxu0 %v369
    %435 = vmatprep.subr.bf16.mxu0 %v372
    %436 = vmatpush1.bf16.msra.mxu0 %v371
    %437 = vmatprep.subr.bf16.mxu0 %v374
    %438 = vmatpush1.bf16.msra.mxu0 %v373
    %439 = vmatprep.subr.bf16.mxu0 %v376
    %440 = vmatpush1.bf16.msra.mxu0 %v375
    %441 = vmatprep.subr.bf16.mxu0 %v378
    %442 = vmatpush1.bf16.msra.mxu0 %v377
    %443 = vmatprep.mubr.bf16.mxu0 %v206
    %444 = vmatmul.mubr.bf16.gmra.mrb[0].mxu0 %v205
    %v445 = vpop.f32.mrb[0].mxu0
    %v446 = vadd.f32 %v244, %v445
    %v447 = vpop.f32.mrb[0].mxu0
    %v448 = vadd.f32 %v248, %v447
    %v449 = vpop.f32.mrb[0].mxu0
    %v450 = vpop.f32.mrb[0].mxu0
    %451 = vdwg.mxu0
    %v452 = vmax.f32 %v446, 0.0
    %v453 = vmax.f32 %v448, 0.0
    %v454 = vld [vmem:[%s7] sm:$0x3]
    %v456 = vlaneseq
    %v457 = vshrl.u32 %v456, 7
    %v458 = vsub.s32 0, %v457
    %v459 = vrot.slane %v454, %v458
    %v460 = vlaneseq
    %v461 = vshrl.u32 %v460, 7
    %v462 = vsub.s32 1, %v461
    %v463 = vrot.slane %v454, %v462
    %v466 = vmul.f32 %v452, %v459
    %v467 = vmul.f32 %v453, %v463
    %v468 = vadd.f32 %v466, %v467
    %469 = vadd.xlane.f32.xlu0 %v468
    %v470 = vpop.xlane.xlu0 %469
    %v471 = vld [vmem:[#allocation2] sm:$0x1]
    %v473 = vlaneseq
    %v474 = vshrl.u32 %v473, 7
    %v475 = vsub.s32 0, %v474
    %v476 = vrot.slane %v471, %v475
    %v478 = vadd.f32 %v470, %v476
    %vm479 = vcmask 7168
    %480 = vst.msk [vmem:[%s9] sm:$0xff] %vm479, %v478
    // Predicated region
    $region46: #{tpu_custom_call.1} parent=1 // pred_check
      _
    $region47: #{tpu_custom_call.1} parent=1 // pred_check_branch
      %482 = sbr.rel (0) target = $region49
    $region48: #{tpu_custom_call.1} parent=1 // pred_region
      _
    $region49: #{tpu_custom_call.1} parent=1 // pred_fallthru
      _
    // Predicated region
    $region50: #{tpu_custom_call.1} parent=1 // pred_check
      _
    $region51: #{tpu_custom_call.1} parent=1 // pred_check_branch
      %484 = sbr.rel (0) target = $region53
    $region52: #{tpu_custom_call.1} parent=1 // pred_region
      _
    $region53: #{tpu_custom_call.1} parent=1 // pred_fallthru
      _
    %485 = vsyncpa [#allocation4], 1
    %486 = vsyncpa [#allocation6], 1

</llo_original>
